<compile_context>
chip_gen: v7x
topology: tpu7x:2x2x1
jax: 0.10.0
libtpu: 0.0.40
codegen_flags: <defaults>
</compile_context>

<pallas_src>
import jax
import jax.numpy as jnp
from jax.experimental import pallas as pl
from jax.experimental.pallas import tpu as pltpu


def _simple_attention_kernel(m_ref, w_ref, scores_ref, pool_ref,
                             m_scr, l_scr, acc_scr):
    # m_ref:      (tT, BB, D) sequence chunk, native (seq, batch, dim) layout
    # w_ref:      (1, D)      Linear(input_dim, 1, bias=False).weight (resident)
    # scores_ref: (tT, BB, 1) raw projection scores (pre-softmax), fp32
    # pool_ref:   (BB, D)     attention-pooled output (written on last k step)
    # m_scr/l_scr:(BB, 1)     running max / running exp-sum (fp32)
    # acc_scr:    (BB, D)     running weighted-sum-of-M accumulator (fp32)
    k = pl.program_id(1)

    @pl.when(k == 0)
    def _init():
        m_scr[...] = jnp.full(m_scr.shape, -jnp.inf, dtype=jnp.float32)
        l_scr[...] = jnp.zeros(l_scr.shape, dtype=jnp.float32)
        acc_scr[...] = jnp.zeros(acc_scr.shape, dtype=jnp.float32)

    m = m_ref[...].astype(jnp.float32)                       # (tT, BB, D)
    w = w_ref[...].astype(jnp.float32)                       # (1, D)

    # scale[t, b] = sum_d M[t, b, d] * w[d]   (lane reduce, keepdims layout)
    s = jnp.sum(m * w, axis=-1, keepdims=True)               # (tT, BB, 1)
    scores_ref[...] = s

    # Online (streaming) softmax over the sequence axis, fused with pooling.
    m_old = m_scr[...]                                       # (BB, 1)
    m_new = jnp.maximum(m_old, jnp.max(s, axis=0))           # (BB, 1)
    corr = jnp.exp(m_old - m_new)                            # (BB, 1)
    p = jnp.exp(s - m_new)                                   # (tT, BB, 1)
    l_scr[...] = corr * l_scr[...] + jnp.sum(p, axis=0)      # (BB, 1)
    acc_scr[...] = corr * acc_scr[...] + jnp.sum(p * m, axis=0)   # (BB, D)
    m_scr[...] = m_new

    @pl.when(k == pl.num_programs(1) - 1)
    def _finalize():
        inv_l = pl.reciprocal(l_scr[...], approx=False)      # (BB, 1), exact
        pool_ref[...] = (acc_scr[...] * inv_l).astype(pool_ref.dtype)


def _choose_block_b(b):
    """Batch block size: a multiple of 8 dividing b (sublane rule, gives a
    'parallel' axis with >=2 steps when possible), else all of b."""
    cands = [x for x in range(8, b, 8) if b % x == 0]
    return max(cands) if cands else b


def _choose_block_t(t, bb, d, target_bytes=2 * 1024 * 1024):
    """Largest sequence chunk dividing t whose fp32 block stays under
    target_bytes (the pipeline double-buffers it, so ~2x that in VMEM)."""
    cap = max(1, target_bytes // (bb * d * 4))
    if cap >= t:
        return t
    best = 1
    for cand in range(1, cap + 1):
        if t % cand == 0:
            best = cand
    return best


def simple_attention(M, weight, x=None, *, block_t=None, block_b=None):
    """M: (seq_len, batch, input_dim); weight: (1, input_dim) [Linear, no bias].

    Returns (attn_pool (batch, input_dim), alpha (batch, 1, seq_len)),
    matching SimpleAttention.forward. `x` is a dummy arg for API compatibility.
    """
    t, b, d = M.shape
    if weight.ndim == 1:
        weight = weight[None, :]
    assert weight.shape == (1, d), weight.shape

    bb = block_b if block_b is not None else _choose_block_b(b)
    assert b % bb == 0 and (bb % 8 == 0 or bb == b), (b, bb)
    tt = block_t if block_t is not None else _choose_block_t(t, bb, d)
    assert t % tt == 0, (t, tt)

    grid = (b // bb, t // tt)

    scores, pool = pl.pallas_call(
        _simple_attention_kernel,
        out_shape=(
            jax.ShapeDtypeStruct((t, b, 1), jnp.float32),    # raw scores
            jax.ShapeDtypeStruct((b, d), M.dtype),           # attn_pool
        ),
        grid_spec=pltpu.PrefetchScalarGridSpec(
            num_scalar_prefetch=0,
            grid=grid,
            in_specs=[
                # Native (T, B, D) layout: no HBM transpose of M anywhere.
                pl.BlockSpec((tt, bb, d), lambda i, k: (k, i, 0)),
                # Constant block index -> weight DMA'd once, stays resident.
                pl.BlockSpec((1, d), lambda i, k: (0, 0)),
            ],
            out_specs=(
                pl.BlockSpec((tt, bb, 1), lambda i, k: (k, i, 0)),
                pl.BlockSpec((bb, d), lambda i, k: (i, 0)),
            ),
            scratch_shapes=[
                pltpu.VMEM((bb, 1), jnp.float32),            # running max
                pltpu.VMEM((bb, 1), jnp.float32),            # running exp-sum
                pltpu.VMEM((bb, d), jnp.float32),            # pool accumulator
            ],
        ),
        compiler_params=pltpu.CompilerParams(
            # Batch blocks are independent (megacore on v7x); the sequence
            # axis is a reduction with resident accumulators -> arbitrary.
            dimension_semantics=("parallel", "arbitrary"),
        ),
    )(M, weight)

    # Finish softmax + permute on the tiny (T, B) score matrix (1/D of M's
    # traffic) in fp32; exactly the reference math, no extra pass over M.
    alpha = jax.nn.softmax(scores[..., 0], axis=0)           # (T, B), fp32
    alpha = jnp.transpose(alpha)[:, None, :].astype(M.dtype)  # (B, 1, T)
    return pool, alpha


def _reference(M, weight):
    Mf = M.astype(jnp.float32)
    wf = weight.astype(jnp.float32)
    scale = jnp.einsum("tbd,d->tb", Mf, wf[0])               # (T, B)
    alpha = jax.nn.softmax(scale, axis=0)                    # (T, B)
    alpha_p = jnp.transpose(alpha)[:, None, :]               # (B, 1, T)
    attn_pool = jnp.einsum("tb,tbd->bd", alpha, Mf)          # (B, D)
    return attn_pool.astype(M.dtype), alpha_p.astype(M.dtype)


def _run_case(key, t, b, d, block_t=None, block_b=None):
    k1, k2 = jax.random.split(key)
    M = jax.random.normal(k1, (t, b, d), dtype=jnp.float32)
    # nn.Linear(input_dim, 1, bias=False).weight has shape (1, input_dim)
    weight = jax.random.normal(k2, (1, d), dtype=jnp.float32) / jnp.sqrt(
        jnp.float32(d)
    )

    attn_pool, alpha = simple_attention(M, weight, block_t=block_t,
                                        block_b=block_b)
    attn_pool = jax.block_until_ready(attn_pool)
    alpha = jax.block_until_ready(alpha)

    ref_pool, ref_alpha = _reference(M, weight)

    assert attn_pool.shape == (b, d), attn_pool.shape
    assert alpha.shape == (b, 1, t), alpha.shape
    assert jnp.allclose(attn_pool, ref_pool, rtol=1e-5, atol=1e-5), (
        attn_pool, ref_pool)
    assert jnp.allclose(alpha, ref_alpha, rtol=1e-5, atol=1e-5), (
        alpha, ref_alpha)


if __name__ == "__main__":
    key = jax.random.PRNGKey(0)
    keys = jax.random.split(key, 3)

    # 1) Tiny docstring-scale shape; whole sequence in one block.
    _run_case(keys[0], t=8, b=2, d=32)
    # 2) Same shape, forced sequence chunking -> exercises the online-softmax
    #    accumulator across "arbitrary" grid steps.
    _run_case(keys[1], t=8, b=2, d=32, block_t=4)
    # 3) Batch a multiple of 8 -> batch-blocked "parallel" axis (2 steps,
    #    megacore-splittable on v7x) plus sequence chunking (4 steps).
    _run_case(keys[2], t=32, b=16, d=128, block_t=8)

    print("KERNEL_OK")
</pallas_src>

<mosaic_0001>
module attributes {stable_mosaic.version = 11 : i64} {
  func.func @_simple_attention_kernel(%arg0: i32, %arg1: i32, %arg2: memref<8x2x32xf32, #tpu.memory_space<vmem>>, %arg3: memref<1x32xf32, #tpu.memory_space<vmem>>, %arg4: memref<8x2x1xf32, #tpu.memory_space<vmem>>, %arg5: memref<2x32xf32, #tpu.memory_space<vmem>>, %arg6: memref<2x1xf32, #tpu.memory_space<vmem>>, %arg7: memref<2x1xf32, #tpu.memory_space<vmem>>, %arg8: memref<2x32xf32, #tpu.memory_space<vmem>>) attributes {dimension_semantics = [#tpu.dimension_semantics<parallel>, #tpu.dimension_semantics<arbitrary>], iteration_bounds = array<i64: 1, 1>, scalar_prefetch = 0 : i64, scratch_operands = 3 : i64, tpu.core_type = #tpu.core_type<tc>, window_params = [{transform_indices = @transform_0, window_bounds = array<i64: 8, 2, 32>}, {pipeline_mode = #tpu.pipeline_mode<synchronous>, transform_indices = @transform_1, window_bounds = array<i64: 1, 32>}, {transform_indices = @transform_2, window_bounds = array<i64: 8, 2, 1>}, {transform_indices = @transform_3, window_bounds = array<i64: 2, 32>}]} {
    %c0_i32 = arith.constant 0 : i32
    %0 = arith.cmpi eq, %arg1, %c0_i32 : i32
    %1 = arith.extui %0 : i1 to i32
    %c0_i32_0 = arith.constant 0 : i32
    %2 = arith.cmpi ne, %1, %c0_i32_0 : i32
    scf.if %2 {
      %cst_25 = arith.constant 0xFF800000 : f32
      %37 = vector.broadcast %cst_25 : f32 to vector<2x1xf32>
      %c0_26 = arith.constant 0 : index
      %c0_27 = arith.constant 0 : index
      %38 = vector.load %arg6[%c0_26, %c0_27] : memref<2x1xf32, #tpu.memory_space<vmem>>, vector<2x1xf32>
      tpu.vector_store %arg6[%c0_26, %c0_27], %37 {strides = array<i32>} : memref<2x1xf32, #tpu.memory_space<vmem>>, vector<2x1xf32>,
      %cst_28 = arith.constant 0.000000e+00 : f32
      %39 = vector.broadcast %cst_28 : f32 to vector<2x1xf32>
      %c0_29 = arith.constant 0 : index
      %c0_30 = arith.constant 0 : index
      %40 = vector.load %arg7[%c0_29, %c0_30] : memref<2x1xf32, #tpu.memory_space<vmem>>, vector<2x1xf32>
      tpu.vector_store %arg7[%c0_29, %c0_30], %39 {strides = array<i32>} : memref<2x1xf32, #tpu.memory_space<vmem>>, vector<2x1xf32>,
      %cst_31 = arith.constant 0.000000e+00 : f32
      %41 = vector.broadcast %cst_31 : f32 to vector<2x32xf32>
      %c0_32 = arith.constant 0 : index
      %c0_33 = arith.constant 0 : index
      %42 = vector.load %arg8[%c0_32, %c0_33] : memref<2x32xf32, #tpu.memory_space<vmem>>, vector<2x32xf32>
      tpu.vector_store %arg8[%c0_32, %c0_33], %41 {strides = array<i32>} : memref<2x32xf32, #tpu.memory_space<vmem>>, vector<2x32xf32>,
    } else {
    }
    %c0 = arith.constant 0 : index
    %c0_1 = arith.constant 0 : index
    %c0_2 = arith.constant 0 : index
    %3 = vector.load %arg2[%c0, %c0_1, %c0_2] : memref<8x2x32xf32, #tpu.memory_space<vmem>>, vector<8x2x32xf32>
    %c0_3 = arith.constant 0 : index
    %c0_4 = arith.constant 0 : index
    %4 = vector.load %arg3[%c0_3, %c0_4] : memref<1x32xf32, #tpu.memory_space<vmem>>, vector<1x32xf32>
    %5 = vector.shape_cast %4 : vector<1x32xf32> to vector<1x1x32xf32>
    %6 = vector.broadcast %5 : vector<1x1x32xf32> to vector<8x2x32xf32>
    %7 = arith.mulf %3, %6 : vector<8x2x32xf32>
    %cst = arith.constant dense<0.000000e+00> : vector<8x2xf32>
    %8 = vector.multi_reduction <add>, %7, %cst [2] : vector<8x2x32xf32> to vector<8x2xf32>
    %9 = vector.shape_cast %8 : vector<8x2xf32> to vector<8x2x1xf32>
    %c0_5 = arith.constant 0 : index
    %c0_6 = arith.constant 0 : index
    %c0_7 = arith.constant 0 : index
    %10 = vector.load %arg4[%c0_5, %c0_6, %c0_7] : memref<8x2x1xf32, #tpu.memory_space<vmem>>, vector<8x2x1xf32>
    tpu.vector_store %arg4[%c0_5, %c0_6, %c0_7], %9 {strides = array<i32>} : memref<8x2x1xf32, #tpu.memory_space<vmem>>, vector<8x2x1xf32>,
    %c0_8 = arith.constant 0 : index
    %c0_9 = arith.constant 0 : index
    %11 = vector.load %arg6[%c0_8, %c0_9] : memref<2x1xf32, #tpu.memory_space<vmem>>, vector<2x1xf32>
    %cst_10 = arith.constant dense<0xFF800000> : vector<2x1xf32>
    %12 = vector.multi_reduction <maximumf>, %9, %cst_10 [0] : vector<8x2x1xf32> to vector<2x1xf32>
    %13 = arith.maximumf %11, %12 : vector<2x1xf32>
    %14 = arith.subf %11, %13 : vector<2x1xf32>
    %15 = math.exp %14 : vector<2x1xf32>
    %16 = vector.shape_cast %13 : vector<2x1xf32> to vector<1x2x1xf32>
    %17 = vector.broadcast %16 : vector<1x2x1xf32> to vector<8x2x1xf32>
    %18 = arith.subf %9, %17 : vector<8x2x1xf32>
    %19 = math.exp %18 : vector<8x2x1xf32>
    %c0_11 = arith.constant 0 : index
    %c0_12 = arith.constant 0 : index
    %20 = vector.load %arg7[%c0_11, %c0_12] : memref<2x1xf32, #tpu.memory_space<vmem>>, vector<2x1xf32>
    %21 = arith.mulf %15, %20 : vector<2x1xf32>
    %cst_13 = arith.constant dense<0.000000e+00> : vector<2x1xf32>
    %22 = vector.multi_reduction <add>, %19, %cst_13 [0] : vector<8x2x1xf32> to vector<2x1xf32>
    %23 = arith.addf %21, %22 : vector<2x1xf32>
    %c0_14 = arith.constant 0 : index
    %c0_15 = arith.constant 0 : index
    %24 = vector.load %arg7[%c0_14, %c0_15] : memref<2x1xf32, #tpu.memory_space<vmem>>, vector<2x1xf32>
    tpu.vector_store %arg7[%c0_14, %c0_15], %23 {strides = array<i32>} : memref<2x1xf32, #tpu.memory_space<vmem>>, vector<2x1xf32>,
    %c0_16 = arith.constant 0 : index
    %c0_17 = arith.constant 0 : index
    %25 = vector.load %arg8[%c0_16, %c0_17] : memref<2x32xf32, #tpu.memory_space<vmem>>, vector<2x32xf32>
    %26 = vector.broadcast %15 : vector<2x1xf32> to vector<2x32xf32>
    %27 = arith.mulf %26, %25 : vector<2x32xf32>
    %28 = vector.broadcast %19 : vector<8x2x1xf32> to vector<8x2x32xf32>
    %29 = arith.mulf %28, %3 : vector<8x2x32xf32>
    %cst_18 = arith.constant dense<0.000000e+00> : vector<2x32xf32>
    %30 = vector.multi_reduction <add>, %29, %cst_18 [0] : vector<8x2x32xf32> to vector<2x32xf32>
    %31 = arith.addf %27, %30 : vector<2x32xf32>
    %c0_19 = arith.constant 0 : index
    %c0_20 = arith.constant 0 : index
    %32 = vector.load %arg8[%c0_19, %c0_20] : memref<2x32xf32, #tpu.memory_space<vmem>>, vector<2x32xf32>
    tpu.vector_store %arg8[%c0_19, %c0_20], %31 {strides = array<i32>} : memref<2x32xf32, #tpu.memory_space<vmem>>, vector<2x32xf32>,
    %c0_21 = arith.constant 0 : index
    %c0_22 = arith.constant 0 : index
    %33 = vector.load %arg6[%c0_21, %c0_22] : memref<2x1xf32, #tpu.memory_space<vmem>>, vector<2x1xf32>
    tpu.vector_store %arg6[%c0_21, %c0_22], %13 {strides = array<i32>} : memref<2x1xf32, #tpu.memory_space<vmem>>, vector<2x1xf32>,
    %c0_i32_23 = arith.constant 0 : i32
    %34 = arith.cmpi eq, %arg1, %c0_i32_23 : i32
    %35 = arith.extui %34 : i1 to i32
    %c0_i32_24 = arith.constant 0 : i32
    %36 = arith.cmpi ne, %35, %c0_i32_24 : i32
    scf.if %36 {
      %c0_25 = arith.constant 0 : index
      %c0_26 = arith.constant 0 : index
      %37 = vector.load %arg7[%c0_25, %c0_26] : memref<2x1xf32, #tpu.memory_space<vmem>>, vector<2x1xf32>
      %38 = tpu.reciprocal %37 : vector<2x1xf32> -> vector<2x1xf32>
      %c0_27 = arith.constant 0 : index
      %c0_28 = arith.constant 0 : index
      %39 = vector.load %arg8[%c0_27, %c0_28] : memref<2x32xf32, #tpu.memory_space<vmem>>, vector<2x32xf32>
      %40 = vector.broadcast %38 : vector<2x1xf32> to vector<2x32xf32>
      %41 = arith.mulf %39, %40 : vector<2x32xf32>
      %c0_29 = arith.constant 0 : index
      %c0_30 = arith.constant 0 : index
      %42 = vector.load %arg5[%c0_29, %c0_30] : memref<2x32xf32, #tpu.memory_space<vmem>>, vector<2x32xf32>
      tpu.vector_store %arg5[%c0_29, %c0_30], %41 {strides = array<i32>} : memref<2x32xf32, #tpu.memory_space<vmem>>, vector<2x32xf32>,
    } else {
    }
    return
  }
  func.func @transform_0(%arg0: i32, %arg1: i32) -> (i32, i32, i32) {
    %c0_i32 = arith.constant 0 : i32
    %c0_i32_0 = arith.constant 0 : i32
    return %arg1, %arg0, %c0_i32 : i32, i32, i32
  }
  func.func @transform_1(%arg0: i32, %arg1: i32) -> (i32, i32) {
    %c0_i32 = arith.constant 0 : i32
    %c0_i32_0 = arith.constant 0 : i32
    %c0_i32_1 = arith.constant 0 : i32
    return %c0_i32, %c0_i32_0 : i32, i32
  }
  func.func @transform_2(%arg0: i32, %arg1: i32) -> (i32, i32, i32) {
    %c0_i32 = arith.constant 0 : i32
    %c0_i32_0 = arith.constant 0 : i32
    return %arg1, %arg0, %c0_i32 : i32, i32, i32
  }
  func.func @transform_3(%arg0: i32, %arg1: i32) -> (i32, i32) {
    %c0_i32 = arith.constant 0 : i32
    %c0_i32_0 = arith.constant 0 : i32
    return %arg0, %c0_i32 : i32, i32
  }
}

</mosaic_0001>

<llo_original>
// kernel: tpu_custom_call.1
$region0: #{tpu_custom_call.1}
  #allocation0 [shape = 'u32[]', space=smem, size = 0x4, offset = 0x4, fixed_abs, tag = 'smem constant byte address 0x4 - core index']
  #allocation1 [shape = 'u32[144,128]{1,0:T(1,128)}', space=vmem, size = 0x12000, scoped, tag = 'internal scratch']
  #allocation2 [shape = 'f32[2,1]{1,0:T(2,128)}', space=vmem, size = 0x400, scoped, tag = 'scratch operand']
  #allocation3 [shape = 'f32[2,1]{1,0:T(2,128)}', space=vmem, size = 0x400, scoped, tag = 'scratch operand']
  #allocation4 [shape = 'f32[2,32]{1,0:T(2,128)}', space=vmem, size = 0x400, scoped, tag = 'scratch operand']
  %s0 = inlined_call_operand.hbm [shape: f32[8,2,32], index: 0, kind: input, shape index: {}]
  %s1 = inlined_call_operand.vmem [shape: f32[1,32], index: 1, kind: input, shape index: {}]
  %s2 = inlined_call_operand.vmem [shape: f32[8,2,1], index: 2, kind: output, shape index: {0}]
  %s3 = inlined_call_operand.hbm [shape: f32[2,32], index: 3, kind: output, shape index: {1}]
  %4 = xla_tuple %s2, %s3
  %s5 = sld [smem:[#allocation0]]
  $region38: #{tpu_custom_call.1} parent=0
    _
  %s7 = ssub.s32 1, %s5
  %s8 = scalar_select 0, %s7, %s5
  $region1: #{tpu_custom_call.1} parent=0
    #allocation5 [shape = 'u8[8192]{0}', space=vmem, size = 0x2000, scoped, tag = 'input window, operand 0, single buffered']
    #allocation6 [shape = 's32[1]{0}', space=sflag, size = 0x4, scoped, tag = 'scoped memory for tpu_custom_call.1']
    #allocation7 [shape = 's32[1]{0}', space=sflag, size = 0x4, scoped, tag = 'scoped memory for tpu_custom_call.1']
    #allocation8 [shape = 'u8[1024]{0}', space=vmem, size = 0x400, scoped, tag = 'output window, operand 1, single buffered']
    %9 = vsyncpa [#allocation6], 0
    %10 = vsyncpa [#allocation7], 0
    // Predicated region
    $region2: #{tpu_custom_call.1} parent=1 // pred_check
      _
    $region3: #{tpu_custom_call.1} parent=1 // pred_check_branch
      %12 = sbr.rel (0) target = $region5
    $region4: #{tpu_custom_call.1} parent=1 // pred_region
      %s14 = ssub.s32 256, 256
      %15 = vsyncadd [#allocation6], %s14
      %s16 = sshll.u32 [#allocation5], 4
      %s17 = int_to_ptr.vmem [resolvable:$true] %s16
      %22 = dma.hbm_to_vmem [thread:$0]  %s0, 256, %s17, [#allocation6], 32, 32, 2
    $region5: #{tpu_custom_call.1} parent=1 // pred_fallthru
      _
    // Predicated region
    $region6: #{tpu_custom_call.1} parent=1 // pred_check
      _
    $region7: #{tpu_custom_call.1} parent=1 // pred_check_branch
      %24 = sbr.rel (0) target = $region9
    $region8: #{tpu_custom_call.1} parent=1 // pred_region
      _
    $region9: #{tpu_custom_call.1} parent=1 // pred_fallthru
      _
    // Predicated region
    $region10: #{tpu_custom_call.1} parent=1 // pred_check
      _
    $region11: #{tpu_custom_call.1} parent=1 // pred_check_branch
      %26 = sbr.rel (0) target = $region13
    $region12: #{tpu_custom_call.1} parent=1 // pred_region
      %27 = dma.done [#allocation6], 256
    $region13: #{tpu_custom_call.1} parent=1 // pred_fallthru
      _
    %p28 = scmp.eq.s32.totalorder 0, 0
    // Predicated region
    $region14: #{tpu_custom_call.1} parent=1 // pred_check
      %p29 = pneg %p28
    $region15: #{tpu_custom_call.1} parent=1 // pred_check_branch
      %31 = sbr.rel (%p29) target = $region17
    $region16: #{tpu_custom_call.1} parent=1 // pred_region
      %vm32 = vcmask 1024
      %33 = vst.msk [vmem:[#allocation2] sm:$0x3] %vm32, -inf
      %34 = vst.msk [vmem:[#allocation3] sm:$0x3] %vm32, 0.0
      %vm35 = vcmask 254976
      %36 = vst.msk [vmem:[#allocation4] sm:$0x3] %vm35, 0.0
    $region17: #{tpu_custom_call.1} parent=1 // pred_fallthru
      _
    %v37 = vld [vmem:[#allocation5] sm:$0x3]
    %v38 = vld [vmem:[#allocation5 + $0x2] sm:$0x3]
    %v39 = vld [vmem:[#allocation5 + $0x4] sm:$0x3]
    %v40 = vld [vmem:[#allocation5 + $0x6] sm:$0x3]
    %v41 = vld [vmem:[#allocation5 + $0x8] sm:$0x3]
    %v42 = vld [vmem:[#allocation5 + $0xa] sm:$0x3]
    %v43 = vld [vmem:[#allocation5 + $0xc] sm:$0x3]
    %v44 = vld [vmem:[#allocation5 + $0xe] sm:$0x3]
    %v45 = vld [vmem:[%s1] sm:$0x1]
    %v47 = vlaneseq
    %v48 = vshrl.u32 %v47, 7
    %v49 = vsub.s32 0, %v48
    %v50 = vrot.slane %v45, %v49
    %v52 = vmul.f32 %v37, %v50
    %v53 = vmul.f32 %v38, %v50
    %v54 = vmul.f32 %v39, %v50
    %v55 = vmul.f32 %v40, %v50
    %v56 = vmul.f32 %v41, %v50
    %v57 = vmul.f32 %v42, %v50
    %v58 = vmul.f32 %v43, %v50
    %v59 = vmul.f32 %v44, %v50
    %vm60 = vcmask 254976
    %v61 = vsel %vm60, %v52, 0.0
    %62 = vadd.xlane.f32.xlu0 %v61
    %v63 = vpop.xlane.xlu0 %62
    %v64 = vsel %vm60, %v53, 0.0
    %65 = vadd.xlane.f32.xlu0 %v64
    %v66 = vpop.xlane.xlu0 %65
    %v67 = vsel %vm60, %v54, 0.0
    %68 = vadd.xlane.f32.xlu0 %v67
    %v69 = vpop.xlane.xlu0 %68
    %v70 = vsel %vm60, %v55, 0.0
    %71 = vadd.xlane.f32.xlu0 %v70
    %v72 = vpop.xlane.xlu0 %71
    %v73 = vsel %vm60, %v56, 0.0
    %74 = vadd.xlane.f32.xlu0 %v73
    %v75 = vpop.xlane.xlu0 %74
    %v76 = vsel %vm60, %v57, 0.0
    %77 = vadd.xlane.f32.xlu0 %v76
    %v78 = vpop.xlane.xlu0 %77
    %v79 = vsel %vm60, %v58, 0.0
    %80 = vadd.xlane.f32.xlu0 %v79
    %v81 = vpop.xlane.xlu0 %80
    %v82 = vsel %vm60, %v59, 0.0
    %83 = vadd.xlane.f32.xlu0 %v82
    %v84 = vpop.xlane.xlu0 %83
    %vm85 = vcmask 1024
    %86 = vst.msk [vmem:[%s2] sm:$0x3] %vm85, %v63
    %87 = vst.msk [vmem:[%s2 + $0x2] sm:$0x3] %vm85, %v66
    %88 = vst.msk [vmem:[%s2 + $0x4] sm:$0x3] %vm85, %v69
    %89 = vst.msk [vmem:[%s2 + $0x6] sm:$0x3] %vm85, %v72
    %90 = vst.msk [vmem:[%s2 + $0x8] sm:$0x3] %vm85, %v75
    %91 = vst.msk [vmem:[%s2 + $0xa] sm:$0x3] %vm85, %v78
    %92 = vst.msk [vmem:[%s2 + $0xc] sm:$0x3] %vm85, %v81
    %93 = vst.msk [vmem:[%s2 + $0xe] sm:$0x3] %vm85, %v84
    %v94 = vld [vmem:[#allocation2] sm:$0x3]
    %vm95 = vcmask 1041408
    %v96 = vsel %vm95, %v63, -inf
    %v97 = vsel %vm95, %v66, -inf
    %v98 = vsel %vm95, %v69, -inf
    %v99 = vsel %vm95, %v72, -inf
    %v100 = vsel %vm95, %v75, -inf
    %v101 = vmax.f32 %v96, %v100
    %v102 = vsel %vm95, %v78, -inf
    %v103 = vmax.f32 %v97, %v102
    %v104 = vsel %vm95, %v81, -inf
    %v105 = vmax.f32 %v98, %v104
    %v106 = vsel %vm95, %v84, -inf
    %v107 = vmax.f32 %v99, %v106
    %v108 = vmax.f32 %v101, %v103
    %v109 = vmax.f32 %v105, %v107
    %v110 = vmax.f32 %v108, %v109
    %v111 = vmax.f32 %v94, %v110
    %v112 = vsub.f32 %v94, %v111
    %v113 = vmul.f32 %v112, 1.442695
    %v114 = vpow.pop %v113
    %v115 = vsub.f32 %v63, %v111
    %v116 = vsub.f32 %v66, %v111
    %v117 = vsub.f32 %v69, %v111
    %v118 = vsub.f32 %v72, %v111
    %v119 = vsub.f32 %v75, %v111
    %v120 = vsub.f32 %v78, %v111
    %v121 = vsub.f32 %v81, %v111
    %v122 = vsub.f32 %v84, %v111
    %v123 = vmul.f32 %v115, 1.442695
    %v124 = vpow.pop %v123
    %v125 = vmul.f32 %v116, 1.442695
    %v126 = vpow.pop %v125
    %v127 = vmul.f32 %v117, 1.442695
    %v128 = vpow.pop %v127
    %v129 = vmul.f32 %v118, 1.442695
    %v130 = vpow.pop %v129
    %v131 = vmul.f32 %v119, 1.442695
    %v132 = vpow.pop %v131
    %v133 = vmul.f32 %v120, 1.442695
    %v134 = vpow.pop %v133
    %v135 = vmul.f32 %v121, 1.442695
    %v136 = vpow.pop %v135
    %v137 = vmul.f32 %v122, 1.442695
    %v138 = vpow.pop %v137
    %v139 = vld [vmem:[#allocation3] sm:$0x3]
    %v140 = vmul.f32 %v114, %v139
    %v141 = vsel %vm85, %v124, 0.0
    %v142 = vsel %vm85, %v126, 0.0
    %v143 = vadd.f32 %v141, %v142
    %v144 = vsel %vm85, %v128, 0.0
    %v145 = vadd.f32 %v143, %v144
    %v146 = vsel %vm85, %v130, 0.0
    %v147 = vadd.f32 %v145, %v146
    %v148 = vsel %vm85, %v132, 0.0
    %v149 = vadd.f32 %v147, %v148
    %v150 = vsel %vm85, %v134, 0.0
    %v151 = vadd.f32 %v149, %v150
    %v152 = vsel %vm85, %v136, 0.0
    %v153 = vadd.f32 %v151, %v152
    %v154 = vsel %vm85, %v138, 0.0
    %v155 = vadd.f32 %v153, %v154
    %v156 = vadd.f32 %v140, %v155
    %157 = vst.msk [vmem:[#allocation3] sm:$0x3] %vm85, %v156
    %v158 = vld [vmem:[#allocation4] sm:$0x3]
    %160 = vset.pattern.permute.xlu0 0
    %161 = vperm.xlu0 %160, %v114
    %v162 = vpop.permute.xlu0 %161
    %v164 = vmul.f32 %v162, %v158
    %166 = vset.pattern.permute.xlu0 0
    %167 = vperm.xlu0 %166, %v124
    %v168 = vpop.permute.xlu0 %167
    %171 = vset.pattern.permute.xlu0 0
    %172 = vperm.xlu0 %171, %v126
    %v173 = vpop.permute.xlu0 %172
    %176 = vset.pattern.permute.xlu0 0
    %177 = vperm.xlu0 %176, %v128
    %v178 = vpop.permute.xlu0 %177
    %181 = vset.pattern.permute.xlu0 0
    %182 = vperm.xlu0 %181, %v130
    %v183 = vpop.permute.xlu0 %182
    %186 = vset.pattern.permute.xlu0 0
    %187 = vperm.xlu0 %186, %v132
    %v188 = vpop.permute.xlu0 %187
    %191 = vset.pattern.permute.xlu0 0
    %192 = vperm.xlu0 %191, %v134
    %v193 = vpop.permute.xlu0 %192
    %196 = vset.pattern.permute.xlu0 0
    %197 = vperm.xlu0 %196, %v136
    %v198 = vpop.permute.xlu0 %197
    %201 = vset.pattern.permute.xlu0 0
    %202 = vperm.xlu0 %201, %v138
    %v203 = vpop.permute.xlu0 %202
    %v205 = vmul.f32 %v168, %v37
    %v206 = vmul.f32 %v173, %v38
    %v207 = vmul.f32 %v178, %v39
    %v208 = vmul.f32 %v183, %v40
    %v209 = vmul.f32 %v188, %v41
    %v210 = vmul.f32 %v193, %v42
    %v211 = vmul.f32 %v198, %v43
    %v212 = vmul.f32 %v203, %v44
    %v213 = vsel %vm60, %v205, 0.0
    %v214 = vsel %vm60, %v206, 0.0
    %v215 = vadd.f32 %v213, %v214
    %v216 = vsel %vm60, %v207, 0.0
    %v217 = vadd.f32 %v215, %v216
    %v218 = vsel %vm60, %v208, 0.0
    %v219 = vadd.f32 %v217, %v218
    %v220 = vsel %vm60, %v209, 0.0
    %v221 = vadd.f32 %v219, %v220
    %v222 = vsel %vm60, %v210, 0.0
    %v223 = vadd.f32 %v221, %v222
    %v224 = vsel %vm60, %v211, 0.0
    %v225 = vadd.f32 %v223, %v224
    %v226 = vsel %vm60, %v212, 0.0
    %v227 = vadd.f32 %v225, %v226
    %v228 = vadd.f32 %v164, %v227
    %229 = vst.msk [vmem:[#allocation4] sm:$0x3] %vm60, %v228
    %230 = vst.msk [vmem:[#allocation2] sm:$0x3] %vm85, %v111
    // Predicated region
    $region18: #{tpu_custom_call.1} parent=1 // pred_check
      %p231 = pneg %p28
    $region19: #{tpu_custom_call.1} parent=1 // pred_check_branch
      %233 = sbr.rel (%p231) target = $region21
    $region20: #{tpu_custom_call.1} parent=1 // pred_region
      %v234 = vld [vmem:[#allocation3] sm:$0x3]
      %v235 = vrcp.pop %v234
      %v236 = vld [vmem:[#allocation4] sm:$0x3]
      %238 = vset.pattern.permute.xlu0 0
      %239 = vperm.xlu0 %238, %v235
      %v240 = vpop.permute.xlu0 %239
      %v242 = vmul.f32 %v236, %v240
      %243 = vst.msk [vmem:[#allocation8] sm:$0x3] %vm60, %v242
    $region21: #{tpu_custom_call.1} parent=1 // pred_fallthru
      _
    // Predicated region
    $region22: #{tpu_custom_call.1} parent=1 // pred_check
      _
    $region23: #{tpu_custom_call.1} parent=1 // pred_check_branch
      %245 = sbr.rel (0) target = $region25
    $region24: #{tpu_custom_call.1} parent=1 // pred_region
      _
    $region25: #{tpu_custom_call.1} parent=1 // pred_fallthru
      _
    // Predicated region
    $region26: #{tpu_custom_call.1} parent=1 // pred_check
      _
    $region27: #{tpu_custom_call.1} parent=1 // pred_check_branch
      %247 = sbr.rel (0) target = $region29
    $region28: #{tpu_custom_call.1} parent=1 // pred_region
      %s249 = ssub.s32 32, 32
      %250 = vsyncadd [#allocation7], %s249
      %s252 = sshll.u32 [#allocation8], 4
      %s253 = int_to_ptr.vmem [resolvable:$true] %s252
      %255 = dma.vmem_to_hbm [thread:$0]  %s253, 32, %s3, [#allocation7]
    $region29: #{tpu_custom_call.1} parent=1 // pred_fallthru
      _
    // Predicated region
    $region30: #{tpu_custom_call.1} parent=1 // pred_check
      _
    $region31: #{tpu_custom_call.1} parent=1 // pred_check_branch
      %257 = sbr.rel (0) target = $region33
    $region32: #{tpu_custom_call.1} parent=1 // pred_region
      _
    $region33: #{tpu_custom_call.1} parent=1 // pred_fallthru
      _
    // Predicated region
    $region34: #{tpu_custom_call.1} parent=1 // pred_check
      _
    $region35: #{tpu_custom_call.1} parent=1 // pred_check_branch
      %259 = sbr.rel (0) target = $region37
    $region36: #{tpu_custom_call.1} parent=1 // pred_region
      %260 = dma.done [#allocation7], 32
    $region37: #{tpu_custom_call.1} parent=1 // pred_fallthru
      _
    %261 = vsyncpa [#allocation6], 1
    %262 = vsyncpa [#allocation7], 1

</llo_original>
